<compile_context>
chip_gen: v5e
topology: v5e:2x2
jax: 0.10.0
libtpu: 0.0.40
codegen_flags: <defaults>
</compile_context>

<pallas_src>
import functools

import jax
import jax.numpy as jnp
from jax import lax
from jax.experimental import pallas as pl
from jax.experimental.pallas import tpu as pltpu


def _class_predictor_kernel(x_ref, w_ref, lab_ref, out_ref,
                            loss_acc, corr_acc, cnt_acc, *, batch_size):
    # x_ref: (TB, C, R) f32 | w_ref: (C, R) f32 | lab_ref: (TB, 1, C) f32
    # out_ref: (1, 2) f32 -> [loss, acc]
    TB, C, R = x_ref.shape
    step = pl.program_id(0)

    @pl.when(step == 0)
    def _init():
        loss_acc[...] = jnp.zeros_like(loss_acc)
        corr_acc[...] = jnp.zeros_like(corr_acc)
        cnt_acc[...] = jnp.zeros_like(cnt_acc)

    x = x_ref[...]                                     # (TB, C, R)
    w = w_ref[...]                                     # (C, R)
    lab = lab_ref[...].reshape(TB, C)                  # (TB, C)

    # 1x1 conv (no bias) == linear.  Single MXU matmul over the whole tile:
    #   logits2d[b*C + c, k] = <x[b, c, :], w[k, :]>
    # The (TB, C, R) -> (TB*C, R) reshape collapses leading dims over full
    # (8, 128) tiles, so it is layout-preserving (no VMEM copy).
    x2d = x.reshape(TB * C, R)
    logits2d = lax.dot_general(
        x2d, w,
        dimension_numbers=(((1,), (1,)), ((), ())),
        preferred_element_type=jnp.float32)            # (TB*C, C)
    logits = logits2d.reshape(TB, C, C)

    # Stable log-softmax over the predicted-class axis (EUP exp/log).
    m = jnp.max(logits, axis=-1, keepdims=True)        # (TB, C, 1)
    lse = jnp.log(jnp.sum(jnp.exp(logits - m), axis=-1, keepdims=True)) + m

    # Target of row (b, c) is class c: take the diagonal with a tiny (C, C)
    # eye mask instead of materializing (TB, C, C) iota tensors.
    r_iota = lax.broadcasted_iota(jnp.int32, (C, C), 0)
    c_iota = lax.broadcasted_iota(jnp.int32, (C, C), 1)
    eye = (r_iota == c_iota).astype(jnp.float32)       # (C, C)
    tgt = jnp.sum(logits * eye[None, :, :], axis=-1, keepdims=True)  # (TB, C, 1)
    ce = (lse - tgt)[..., 0]                           # (TB, C)

    # argmax (first maximal index, matching torch/jnp argmax) reusing the row
    # max `m` and the same (C, C) column iota (broadcast over the tile).
    masked_idx = jnp.where(logits >= m, c_iota[None, :, :], C)
    pred = jnp.min(masked_idx, axis=-1)                # (TB, C) int32
    cls = lax.broadcasted_iota(jnp.int32, (TB, C), 1)
    correct = (pred == cls).astype(jnp.float32)        # (TB, C)

    # Same reduction as the PyTorch python loop (padded rows have mask == 0,
    # so they contribute nothing to any accumulator).
    mask = (lab > 0).astype(jnp.float32)               # (TB, C)
    n_i = jnp.sum(mask, axis=1, keepdims=True)         # (TB, 1)
    per_sample = jnp.sum(ce * mask, axis=1, keepdims=True) / jnp.maximum(n_i, 1.0)

    loss_acc[...] += jnp.sum(per_sample, axis=0, keepdims=True)
    corr_acc[...] += jnp.sum(jnp.sum(correct * mask, axis=1, keepdims=True),
                             axis=0, keepdims=True)
    cnt_acc[...] += jnp.sum(jnp.sum(mask, axis=1, keepdims=True),
                            axis=0, keepdims=True)

    @pl.when(step == pl.num_programs(0) - 1)
    def _finalize():
        out_ref[:, 0:1] = loss_acc[...] * (1.0 / batch_size)
        out_ref[:, 1:2] = corr_acc[...] / cnt_acc[...]


def class_predictor_forward(x, label, weight, *, x_block_bytes=4 * 1024 * 1024):
    """x: (B, C*R) or (B, C, R); label: (B, C) multi-hot; weight: (C, R)
    (the squeezed 1x1 conv weight).  Returns (loss, acc)."""
    C, R = weight.shape
    B = x.shape[0]
    x3 = jnp.reshape(x, (B, C, R)).astype(jnp.float32)
    lab = jnp.reshape(label.astype(jnp.float32), (B, 1, C))
    w = weight.astype(jnp.float32)

    # Batch tile from a conservative per-block VMEM budget (the pipeline
    # double-buffers it); rounded down to a multiple of 8 samples when big
    # enough so the x-tile DMA stays sublane aligned.
    bytes_per_sample = C * R * 4
    tb = int(min(B, max(1, x_block_bytes // bytes_per_sample)))
    if tb >= 8:
        tb -= tb % 8
    n_tiles = -(-B // tb)
    Bp = n_tiles * tb
    if Bp != B:  # pad: extra rows have label == 0, so they contribute nothing
        x3 = jnp.pad(x3, ((0, Bp - B), (0, 0), (0, 0)))
        lab = jnp.pad(lab, ((0, Bp - B), (0, 0), (0, 0)))

    kernel = functools.partial(_class_predictor_kernel, batch_size=float(B))

    grid_spec = pltpu.PrefetchScalarGridSpec(
        num_scalar_prefetch=0,
        grid=(n_tiles,),
        in_specs=[
            pl.BlockSpec((tb, C, R), lambda i: (i, 0, 0)),   # x tile (pipelined)
            pl.BlockSpec((C, R), lambda i: (0, 0)),          # weights (resident)
            pl.BlockSpec((tb, 1, C), lambda i: (i, 0, 0)),   # label tile
        ],
        out_specs=pl.BlockSpec((1, 2), lambda i: (0, 0)),    # [loss, acc]
        scratch_shapes=[pltpu.VMEM((1, 1), jnp.float32),
                        pltpu.VMEM((1, 1), jnp.float32),
                        pltpu.VMEM((1, 1), jnp.float32)],
    )

    out = pl.pallas_call(
        kernel,
        out_shape=jax.ShapeDtypeStruct((1, 2), jnp.float32),
        grid_spec=grid_spec,
        # Grid axis carries the accumulators -> sequential ("arbitrary").
        compiler_params=pltpu.CompilerParams(
            dimension_semantics=("arbitrary",)),
        cost_estimate=pl.CostEstimate(
            flops=2 * Bp * C * C * R + 8 * Bp * C * C,
            transcendentals=Bp * C * C,
            bytes_accessed=4 * (Bp * C * R + C * R + Bp * C + 2)),
    )(x3, w, lab)
    return out[0, 0], out[0, 1]


def _reference(x3, label, weight):
    """Pure-JAX reference of the PyTorch forward (correctness check)."""
    B, C, R = x3.shape
    logits = jnp.einsum('bcr,kr->bck', x3, weight)
    lse = jax.scipy.special.logsumexp(logits, axis=-1)               # (B, C)
    tgt = jnp.diagonal(logits, axis1=1, axis2=2)                     # (B, C)
    ce = lse - tgt
    mask = (label > 0).astype(jnp.float32)
    n_i = mask.sum(axis=1)
    per_sample = jnp.where(n_i > 0, (ce * mask).sum(axis=1) / jnp.maximum(n_i, 1.0), 0.0)
    loss = per_sample.sum() / B
    pred = jnp.argmax(logits, axis=-1)
    cls = jnp.arange(C)[None, :]
    acc = ((pred == cls).astype(jnp.float32) * mask).sum() / mask.sum()
    return loss, acc


if __name__ == "__main__":
    num_classes = 8
    representation_size = 128
    batch = 2

    key = jax.random.PRNGKey(0)
    kx, kw, kl = jax.random.split(key, 3)

    # Deterministic synthetic inputs / parameters (no checkpoint loading).
    x = jax.random.normal(kx, (batch, num_classes * representation_size),
                          dtype=jnp.float32)
    weight = jax.random.normal(kw, (num_classes, representation_size),
                               dtype=jnp.float32) / jnp.sqrt(float(representation_size))
    label = (jax.random.uniform(kl, (batch, num_classes)) > 0.5).astype(jnp.float32)
    label = label.at[:, 0].set(1.0)   # guarantee >=1 positive per sample

    loss, acc = class_predictor_forward(x, label, weight)
    (loss, acc) = jax.block_until_ready((loss, acc))

    ref_loss, ref_acc = _reference(
        x.reshape(batch, num_classes, representation_size), label, weight)
    assert jnp.allclose(loss, ref_loss, rtol=1e-4, atol=1e-4), (loss, ref_loss)
    assert jnp.allclose(acc, ref_acc, rtol=1e-4, atol=1e-4), (acc, ref_acc)

    print("KERNEL_OK")
</pallas_src>

<mosaic_0001>
module attributes {stable_mosaic.version = 11 : i64} {
  func.func @_class_predictor_kernel(%arg0: i32, %arg1: memref<2x8x128xf32, #tpu.memory_space<vmem>>, %arg2: memref<8x128xf32, #tpu.memory_space<vmem>>, %arg3: memref<2x1x8xf32, #tpu.memory_space<vmem>>, %arg4: memref<1x2xf32, #tpu.memory_space<vmem>>, %arg5: memref<1x1xf32, #tpu.memory_space<vmem>>, %arg6: memref<1x1xf32, #tpu.memory_space<vmem>>, %arg7: memref<1x1xf32, #tpu.memory_space<vmem>>) attributes {dimension_semantics = [#tpu.dimension_semantics<arbitrary>], iteration_bounds = array<i64: 1>, scalar_prefetch = 0 : i64, scratch_operands = 3 : i64, tpu.core_type = #tpu.core_type<tc>, window_params = [{transform_indices = @transform_0, window_bounds = array<i64: 2, 8, 128>}, {pipeline_mode = #tpu.pipeline_mode<synchronous>, transform_indices = @transform_1, window_bounds = array<i64: 8, 128>}, {transform_indices = @transform_2, window_bounds = array<i64: 2, 1, 8>}, {pipeline_mode = #tpu.pipeline_mode<synchronous>, transform_indices = @transform_3, window_bounds = array<i64: 1, 2>}]} {
    %c0_i32 = arith.constant 0 : i32
    %0 = arith.cmpi eq, %arg0, %c0_i32 : i32
    %1 = arith.extui %0 : i1 to i32
    %c0_i32_0 = arith.constant 0 : i32
    %2 = arith.cmpi ne, %1, %c0_i32_0 : i32
    scf.if %2 {
      %cst_35 = arith.constant 0.000000e+00 : f32
      %78 = vector.broadcast %cst_35 : f32 to vector<1x1xf32>
      %c0_36 = arith.constant 0 : index
      %c0_37 = arith.constant 0 : index
      %79 = vector.load %arg5[%c0_36, %c0_37] : memref<1x1xf32, #tpu.memory_space<vmem>>, vector<1x1xf32>
      tpu.vector_store %arg5[%c0_36, %c0_37], %78 {strides = array<i32>} : memref<1x1xf32, #tpu.memory_space<vmem>>, vector<1x1xf32>,
      %cst_38 = arith.constant 0.000000e+00 : f32
      %80 = vector.broadcast %cst_38 : f32 to vector<1x1xf32>
      %c0_39 = arith.constant 0 : index
      %c0_40 = arith.constant 0 : index
      %81 = vector.load %arg6[%c0_39, %c0_40] : memref<1x1xf32, #tpu.memory_space<vmem>>, vector<1x1xf32>
      tpu.vector_store %arg6[%c0_39, %c0_40], %80 {strides = array<i32>} : memref<1x1xf32, #tpu.memory_space<vmem>>, vector<1x1xf32>,
      %cst_41 = arith.constant 0.000000e+00 : f32
      %82 = vector.broadcast %cst_41 : f32 to vector<1x1xf32>
      %c0_42 = arith.constant 0 : index
      %c0_43 = arith.constant 0 : index
      %83 = vector.load %arg7[%c0_42, %c0_43] : memref<1x1xf32, #tpu.memory_space<vmem>>, vector<1x1xf32>
      tpu.vector_store %arg7[%c0_42, %c0_43], %82 {strides = array<i32>} : memref<1x1xf32, #tpu.memory_space<vmem>>, vector<1x1xf32>,
    } else {
    }
    %c0 = arith.constant 0 : index
    %c0_1 = arith.constant 0 : index
    %c0_2 = arith.constant 0 : index
    %3 = vector.load %arg1[%c0, %c0_1, %c0_2] : memref<2x8x128xf32, #tpu.memory_space<vmem>>, vector<2x8x128xf32>
    %c0_3 = arith.constant 0 : index
    %c0_4 = arith.constant 0 : index
    %4 = vector.load %arg2[%c0_3, %c0_4] : memref<8x128xf32, #tpu.memory_space<vmem>>, vector<8x128xf32>
    %c0_5 = arith.constant 0 : index
    %c0_6 = arith.constant 0 : index
    %c0_7 = arith.constant 0 : index
    %5 = vector.load %arg3[%c0_5, %c0_6, %c0_7] : memref<2x1x8xf32, #tpu.memory_space<vmem>>, vector<2x1x8xf32>
    %6 = vector.shape_cast %5 : vector<2x1x8xf32> to vector<2x8xf32>
    %7 = vector.shape_cast %3 : vector<2x8x128xf32> to vector<16x128xf32>
    %cst = arith.constant dense<0.000000e+00> : vector<16x8xf32>
    %8 = tpu.matmul %7, %4, %cst {dimension_numbers = #tpu.dot_dimension_numbers<[1], [1], [0], [0], [0, 0, 1, 0], [], []>} : vector<16x128xf32>, vector<8x128xf32>, vector<16x8xf32> -> vector<16x8xf32>
    %9 = vector.shape_cast %8 : vector<16x8xf32> to vector<2x8x8xf32>
    %cst_8 = arith.constant dense<0xFF800000> : vector<2x8xf32>
    %10 = vector.multi_reduction <maximumf>, %9, %cst_8 [2] : vector<2x8x8xf32> to vector<2x8xf32>
    %11 = vector.shape_cast %10 : vector<2x8xf32> to vector<2x8x1xf32>
    %12 = vector.broadcast %11 : vector<2x8x1xf32> to vector<2x8x8xf32>
    %13 = arith.subf %9, %12 : vector<2x8x8xf32>
    %14 = math.exp %13 : vector<2x8x8xf32>
    %cst_9 = arith.constant dense<0.000000e+00> : vector<2x8xf32>
    %15 = vector.multi_reduction <add>, %14, %cst_9 [2] : vector<2x8x8xf32> to vector<2x8xf32>
    %16 = vector.shape_cast %15 : vector<2x8xf32> to vector<2x8x1xf32>
    %17 = math.log %16 : vector<2x8x1xf32>
    %18 = arith.addf %17, %11 : vector<2x8x1xf32>
    %19 = tpu.iota {dimensions = array<i32: 0>} : vector<8x8xi32>
    %20 = tpu.iota {dimensions = array<i32: 1>} : vector<8x8xi32>
    %21 = arith.cmpi eq, %19, %20 : vector<8x8xi32>
    %22 = arith.extui %21 : vector<8x8xi1> to vector<8x8xi32>
    %23 = arith.sitofp %22 : vector<8x8xi32> to vector<8x8xf32>
    %24 = vector.shape_cast %23 : vector<8x8xf32> to vector<1x8x8xf32>
    %25 = vector.broadcast %24 : vector<1x8x8xf32> to vector<2x8x8xf32>
    %26 = arith.mulf %9, %25 : vector<2x8x8xf32>
    %cst_10 = arith.constant dense<0.000000e+00> : vector<2x8xf32>
    %27 = vector.multi_reduction <add>, %26, %cst_10 [2] : vector<2x8x8xf32> to vector<2x8xf32>
    %28 = vector.shape_cast %27 : vector<2x8xf32> to vector<2x8x1xf32>
    %29 = arith.subf %18, %28 : vector<2x8x1xf32>
    %30 = vector.shape_cast %29 : vector<2x8x1xf32> to vector<2x8xf32>
    %31 = vector.broadcast %11 : vector<2x8x1xf32> to vector<2x8x8xf32>
    %32 = arith.cmpf oge, %9, %31 : vector<2x8x8xf32>
    %33 = vector.shape_cast %20 : vector<8x8xi32> to vector<1x8x8xi32>
    %c8_i32 = arith.constant 8 : i32
    %34 = vector.shape_cast %33 : vector<1x8x8xi32> to vector<1x8x8xi32>
    %35 = vector.broadcast %34 : vector<1x8x8xi32> to vector<2x8x8xi32>
    %36 = vector.broadcast %c8_i32 : i32 to vector<2x8x8xi32>
    %37 = arith.select %32, %35, %36 : vector<2x8x8xi1>, vector<2x8x8xi32>
    %cst_11 = arith.constant dense<2147483647> : vector<2x8xi32>
    %38 = vector.multi_reduction <minsi>, %37, %cst_11 [2] : vector<2x8x8xi32> to vector<2x8xi32>
    %39 = tpu.iota {dimensions = array<i32: 1>} : vector<2x8xi32>
    %40 = arith.cmpi eq, %38, %39 : vector<2x8xi32>
    %41 = arith.extui %40 : vector<2x8xi1> to vector<2x8xi32>
    %42 = arith.sitofp %41 : vector<2x8xi32> to vector<2x8xf32>
    %cst_12 = arith.constant 0.000000e+00 : f32
    %43 = vector.broadcast %cst_12 : f32 to vector<2x8xf32>
    %44 = arith.cmpf ogt, %6, %43 : vector<2x8xf32>
    %45 = arith.extui %44 : vector<2x8xi1> to vector<2x8xi32>
    %46 = arith.sitofp %45 : vector<2x8xi32> to vector<2x8xf32>
    %cst_13 = arith.constant dense<0.000000e+00> : vector<2xf32>
    %47 = vector.multi_reduction <add>, %46, %cst_13 [1] : vector<2x8xf32> to vector<2xf32>
    %48 = vector.shape_cast %47 : vector<2xf32> to vector<2x1xf32>
    %49 = arith.mulf %30, %46 : vector<2x8xf32>
    %cst_14 = arith.constant dense<0.000000e+00> : vector<2xf32>
    %50 = vector.multi_reduction <add>, %49, %cst_14 [1] : vector<2x8xf32> to vector<2xf32>
    %51 = vector.shape_cast %50 : vector<2xf32> to vector<2x1xf32>
    %cst_15 = arith.constant 1.000000e+00 : f32
    %52 = vector.broadcast %cst_15 : f32 to vector<2x1xf32>
    %53 = arith.maximumf %48, %52 : vector<2x1xf32>
    %54 = arith.divf %51, %53 : vector<2x1xf32>
    %c0_16 = arith.constant 0 : index
    %c0_17 = arith.constant 0 : index
    %55 = vector.load %arg5[%c0_16, %c0_17] : memref<1x1xf32, #tpu.memory_space<vmem>>, vector<1x1xf32>
    %cst_18 = arith.constant dense<0.000000e+00> : vector<1xf32>
    %56 = vector.multi_reduction <add>, %54, %cst_18 [0] : vector<2x1xf32> to vector<1xf32>
    %57 = vector.shape_cast %56 : vector<1xf32> to vector<1x1xf32>
    %58 = arith.addf %55, %57 : vector<1x1xf32>
    %c0_19 = arith.constant 0 : index
    %c0_20 = arith.constant 0 : index
    %59 = vector.load %arg5[%c0_19, %c0_20] : memref<1x1xf32, #tpu.memory_space<vmem>>, vector<1x1xf32>
    tpu.vector_store %arg5[%c0_19, %c0_20], %58 {strides = array<i32>} : memref<1x1xf32, #tpu.memory_space<vmem>>, vector<1x1xf32>,
    %c0_21 = arith.constant 0 : index
    %c0_22 = arith.constant 0 : index
    %60 = vector.load %arg6[%c0_21, %c0_22] : memref<1x1xf32, #tpu.memory_space<vmem>>, vector<1x1xf32>
    %61 = arith.mulf %42, %46 : vector<2x8xf32>
    %cst_23 = arith.constant dense<0.000000e+00> : vector<2xf32>
    %62 = vector.multi_reduction <add>, %61, %cst_23 [1] : vector<2x8xf32> to vector<2xf32>
    %63 = vector.shape_cast %62 : vector<2xf32> to vector<2x1xf32>
    %cst_24 = arith.constant dense<0.000000e+00> : vector<1xf32>
    %64 = vector.multi_reduction <add>, %63, %cst_24 [0] : vector<2x1xf32> to vector<1xf32>
    %65 = vector.shape_cast %64 : vector<1xf32> to vector<1x1xf32>
    %66 = arith.addf %60, %65 : vector<1x1xf32>
    %c0_25 = arith.constant 0 : index
    %c0_26 = arith.constant 0 : index
    %67 = vector.load %arg6[%c0_25, %c0_26] : memref<1x1xf32, #tpu.memory_space<vmem>>, vector<1x1xf32>
    tpu.vector_store %arg6[%c0_25, %c0_26], %66 {strides = array<i32>} : memref<1x1xf32, #tpu.memory_space<vmem>>, vector<1x1xf32>,
    %c0_27 = arith.constant 0 : index
    %c0_28 = arith.constant 0 : index
    %68 = vector.load %arg7[%c0_27, %c0_28] : memref<1x1xf32, #tpu.memory_space<vmem>>, vector<1x1xf32>
    %cst_29 = arith.constant dense<0.000000e+00> : vector<2xf32>
    %69 = vector.multi_reduction <add>, %46, %cst_29 [1] : vector<2x8xf32> to vector<2xf32>
    %70 = vector.shape_cast %69 : vector<2xf32> to vector<2x1xf32>
    %cst_30 = arith.constant dense<0.000000e+00> : vector<1xf32>
    %71 = vector.multi_reduction <add>, %70, %cst_30 [0] : vector<2x1xf32> to vector<1xf32>
    %72 = vector.shape_cast %71 : vector<1xf32> to vector<1x1xf32>
    %73 = arith.addf %68, %72 : vector<1x1xf32>
    %c0_31 = arith.constant 0 : index
    %c0_32 = arith.constant 0 : index
    %74 = vector.load %arg7[%c0_31, %c0_32] : memref<1x1xf32, #tpu.memory_space<vmem>>, vector<1x1xf32>
    tpu.vector_store %arg7[%c0_31, %c0_32], %73 {strides = array<i32>} : memref<1x1xf32, #tpu.memory_space<vmem>>, vector<1x1xf32>,
    %c0_i32_33 = arith.constant 0 : i32
    %75 = arith.cmpi eq, %arg0, %c0_i32_33 : i32
    %76 = arith.extui %75 : i1 to i32
    %c0_i32_34 = arith.constant 0 : i32
    %77 = arith.cmpi ne, %76, %c0_i32_34 : i32
    scf.if %77 {
      %c0_35 = arith.constant 0 : index
      %c0_36 = arith.constant 0 : index
      %78 = vector.load %arg5[%c0_35, %c0_36] : memref<1x1xf32, #tpu.memory_space<vmem>>, vector<1x1xf32>
      %cst_37 = arith.constant 5.000000e-01 : f32
      %79 = vector.broadcast %cst_37 : f32 to vector<1x1xf32>
      %80 = arith.mulf %78, %79 : vector<1x1xf32>
      %c0_38 = arith.constant 0 : index
      %c0_39 = arith.constant 0 : index
      %81 = vector.load %arg4[%c0_38, %c0_39] : memref<1x2xf32, #tpu.memory_space<vmem>>, vector<1x1xf32>
      tpu.vector_store %arg4[%c0_38, %c0_39], %80 {strides = array<i32>} : memref<1x2xf32, #tpu.memory_space<vmem>>, vector<1x1xf32>,
      %c0_40 = arith.constant 0 : index
      %c0_41 = arith.constant 0 : index
      %82 = vector.load %arg6[%c0_40, %c0_41] : memref<1x1xf32, #tpu.memory_space<vmem>>, vector<1x1xf32>
      %c0_42 = arith.constant 0 : index
      %c0_43 = arith.constant 0 : index
      %83 = vector.load %arg7[%c0_42, %c0_43] : memref<1x1xf32, #tpu.memory_space<vmem>>, vector<1x1xf32>
      %84 = arith.divf %82, %83 : vector<1x1xf32>
      %c0_44 = arith.constant 0 : index
      %c1 = arith.constant 1 : index
      %85 = vector.load %arg4[%c0_44, %c1] : memref<1x2xf32, #tpu.memory_space<vmem>>, vector<1x1xf32>
      tpu.vector_store %arg4[%c0_44, %c1], %84 {strides = array<i32>} : memref<1x2xf32, #tpu.memory_space<vmem>>, vector<1x1xf32>,
    } else {
    }
    return
  }
  func.func @transform_0(%arg0: i32) -> (i32, i32, i32) {
    %c0_i32 = arith.constant 0 : i32
    %c0_i32_0 = arith.constant 0 : i32
    %c0_i32_1 = arith.constant 0 : i32
    return %arg0, %c0_i32, %c0_i32_0 : i32, i32, i32
  }
  func.func @transform_1(%arg0: i32) -> (i32, i32) {
    %c0_i32 = arith.constant 0 : i32
    %c0_i32_0 = arith.constant 0 : i32
    %c0_i32_1 = arith.constant 0 : i32
    return %c0_i32, %c0_i32_0 : i32, i32
  }
  func.func @transform_2(%arg0: i32) -> (i32, i32, i32) {
    %c0_i32 = arith.constant 0 : i32
    %c0_i32_0 = arith.constant 0 : i32
    %c0_i32_1 = arith.constant 0 : i32
    return %arg0, %c0_i32, %c0_i32_0 : i32, i32, i32
  }
  func.func @transform_3(%arg0: i32) -> (i32, i32) {
    %c0_i32 = arith.constant 0 : i32
    %c0_i32_0 = arith.constant 0 : i32
    %c0_i32_1 = arith.constant 0 : i32
    return %c0_i32, %c0_i32_0 : i32, i32
  }
}

</mosaic_0001>

<llo_original>
// kernel: tpu_custom_call.1
$region0: #{tpu_custom_call.1}
  #allocation0 [shape = 'u32[]', space=smem, size = 0x4, offset = 0x4, fixed_abs, tag = 'smem constant byte address 0x4 - core index']
  #allocation1 [shape = 'u32[72,128]{1,0:T(1,128)}', space=vmem, size = 0x9000, scoped, tag = 'internal scratch']
  #allocation2 [shape = 'f32[1,1]{1,0:T(1,128)}', space=vmem, size = 0x200, scoped, tag = 'scratch operand']
  #allocation3 [shape = 'f32[1,1]{1,0:T(1,128)}', space=vmem, size = 0x200, scoped, tag = 'scratch operand']
  #allocation4 [shape = 'f32[1,1]{1,0:T(1,128)}', space=vmem, size = 0x200, scoped, tag = 'scratch operand']
  %s0 = inlined_call_operand.hbm [shape: f32[2,8,128], index: 0, kind: input, shape index: {}]
  %s1 = inlined_call_operand.hbm [shape: f32[8,128], index: 1, kind: input, shape index: {}]
  %s2 = inlined_call_operand.hbm [shape: f32[2,1,8], index: 2, kind: input, shape index: {}]
  %s3 = inlined_call_operand.hbm [shape: f32[1,2], index: 3, kind: output, shape index: {}]
  %s4 = sld [smem:[#allocation0]]
  $region42: #{tpu_custom_call.1} parent=0
    _
  %s6 = ssub.s32 1, %s4
  %s7 = scalar_select 0, %s6, %s4
  $region1: #{tpu_custom_call.1} parent=0
    #allocation5 [shape = 'u8[8192]{0}', space=vmem, size = 0x2000, scoped, tag = 'input window, operand 0, single buffered']
    #allocation6 [shape = 's32[1]{0}', space=sflag, size = 0x4, scoped, tag = 'scoped memory for tpu_custom_call.1']
    #allocation7 [shape = 's32[1]{0}', space=sflag, size = 0x4, scoped, tag = 'scoped memory for tpu_custom_call.1']
    #allocation8 [shape = 'u8[4096]{0}', space=vmem, size = 0x1000, scoped, tag = 'input window, operand 1, single buffered']
    #allocation9 [shape = 's32[1]{0}', space=sflag, size = 0x4, scoped, tag = 'scoped memory for tpu_custom_call.1']
    #allocation10 [shape = 'u8[1024]{0}', space=vmem, size = 0x400, scoped, tag = 'input window, operand 2, single buffered']
    #allocation11 [shape = 'u8[512]{0}', space=vmem, size = 0x400, scoped, tag = 'output window, operand 0, single buffered']
    %8 = vsyncpa [#allocation6], 0
    %9 = vsyncpa [#allocation9], 0
    %10 = vsyncpa [#allocation7], 0
    // Predicated region
    $region2: #{tpu_custom_call.1} parent=1 // pred_check
      _
    $region3: #{tpu_custom_call.1} parent=1 // pred_check_branch
      %12 = sbr.rel (0) target = $region5
    $region4: #{tpu_custom_call.1} parent=1 // pred_region
      %14 = vsyncadd [#allocation6], 0
      %s15 = sshll.u32 %s0, 4
      %s16 = int_to_ptr.hbm [resolvable:$true] %s15
      %s17 = sshll.u32 [#allocation5], 4
      %s18 = int_to_ptr.vmem [resolvable:$true] %s17
      %23 = dma.hbm_to_vmem [thread:$0]  %s16, 256, %s18, [#allocation6], 128, 128, 8
    $region5: #{tpu_custom_call.1} parent=1 // pred_fallthru
      _
    // Predicated region
    $region6: #{tpu_custom_call.1} parent=1 // pred_check
      _
    $region7: #{tpu_custom_call.1} parent=1 // pred_check_branch
      %25 = sbr.rel (0) target = $region9
    $region8: #{tpu_custom_call.1} parent=1 // pred_region
      %27 = vsyncadd [#allocation9], 0
      %s29 = sshll.u32 %s1, 4
      %s30 = int_to_ptr.hbm [resolvable:$true] %s29
      %s31 = sshll.u32 [#allocation8], 4
      %s32 = int_to_ptr.vmem [resolvable:$true] %s31
      %34 = dma.hbm_to_vmem [thread:$0]  %s30, 128, %s32, [#allocation9]
    $region9: #{tpu_custom_call.1} parent=1 // pred_fallthru
      _
    // Predicated region
    $region10: #{tpu_custom_call.1} parent=1 // pred_check
      _
    $region11: #{tpu_custom_call.1} parent=1 // pred_check_branch
      %36 = sbr.rel (0) target = $region13
    $region12: #{tpu_custom_call.1} parent=1 // pred_region
      %38 = vsyncadd [#allocation9], 0
      %s39 = sshll.u32 %s2, 4
      %s40 = int_to_ptr.hbm [resolvable:$true] %s39
      %s41 = sshll.u32 [#allocation10], 4
      %s42 = int_to_ptr.vmem [resolvable:$true] %s41
      %47 = dma.hbm_to_vmem [thread:$0]  %s40, 32, %s42, [#allocation9], 16, 16, 1
    $region13: #{tpu_custom_call.1} parent=1 // pred_fallthru
      _
    // Predicated region
    $region14: #{tpu_custom_call.1} parent=1 // pred_check
      _
    $region15: #{tpu_custom_call.1} parent=1 // pred_check_branch
      %49 = sbr.rel (0) target = $region17
    $region16: #{tpu_custom_call.1} parent=1 // pred_region
      %51 = dma.done [#allocation6], 256
    $region17: #{tpu_custom_call.1} parent=1 // pred_fallthru
      _
    // Predicated region
    $region18: #{tpu_custom_call.1} parent=1 // pred_check
      _
    $region19: #{tpu_custom_call.1} parent=1 // pred_check_branch
      %53 = sbr.rel (0) target = $region21
    $region20: #{tpu_custom_call.1} parent=1 // pred_region
      %55 = dma.done [#allocation9], 128
    $region21: #{tpu_custom_call.1} parent=1 // pred_fallthru
      _
    // Predicated region
    $region22: #{tpu_custom_call.1} parent=1 // pred_check
      _
    $region23: #{tpu_custom_call.1} parent=1 // pred_check_branch
      %57 = sbr.rel (0) target = $region25
    $region24: #{tpu_custom_call.1} parent=1 // pred_region
      %59 = dma.done [#allocation9], 32
    $region25: #{tpu_custom_call.1} parent=1 // pred_fallthru
      _
    %p60 = scmp.eq.s32.totalorder 0, 0
    // Predicated region
    $region26: #{tpu_custom_call.1} parent=1 // pred_check
      %p61 = pneg %p60
    $region27: #{tpu_custom_call.1} parent=1 // pred_check_branch
      %63 = sbr.rel (%p61) target = $region29
    $region28: #{tpu_custom_call.1} parent=1 // pred_region
      %vm64 = vcmask 0
      %65 = vst.msk [vmem:[#allocation2] sm:$0x1] %vm64, 0.0
      %66 = vst.msk [vmem:[#allocation3] sm:$0x1] %vm64, 0.0
      %67 = vst.msk [vmem:[#allocation4] sm:$0x1] %vm64, 0.0
    $region29: #{tpu_custom_call.1} parent=1 // pred_fallthru
      _
    %v68 = vld [vmem:[#allocation5] sm:$0xff]
    %v69 = vld [vmem:[#allocation5 + $0x8] sm:$0xff]
    %v70 = vld [vmem:[#allocation8] sm:$0xff]
    %v71 = vld [vmem:[#allocation10] sm:$0x1]
    %v72 = vld [vmem:[#allocation10 + $0x1] sm:$0x1]
    %73 = vmatpush.xpose.msra.mxu0 0.0
    %74 = vmatpush.xpose.msra.mxu0 0.0
    %75 = vmatpush.xpose.msra.mxu0 0.0
    %76 = vmatpush.xpose.msra.mxu0 0.0
    %77 = vmatpush.xpose.msra.mxu0 0.0
    %78 = vmatpush.xpose.msra.mxu0 0.0
    %79 = vmatpush.xpose.msra.mxu0 0.0
    %80 = vmatpush.xpose.msra.mxu0 0.0
    %81 = vmatpush.xpose.msra.mxu0 0.0
    %82 = vmatpush.xpose.msra.mxu0 0.0
    %83 = vmatpush.xpose.msra.mxu0 0.0
    %84 = vmatpush.xpose.msra.mxu0 0.0
    %85 = vmatpush.xpose.msra.mxu0 0.0
    %86 = vmatpush.xpose.msra.mxu0 0.0
    %87 = vmatpush.xpose.msra.mxu0 0.0
    %88 = vmatpush.xpose.msra.mxu0 %v70
    %89 = vmatmul.f32.gmra.mxu0 %v68
    %v90 = vpop.f32.mrf.mxu0
    %v91 = vadd.f32 0.0, %v90
    %92 = vmatmul.f32.gmra.mxu0 %v69
    %v93 = vpop.f32.mrf.mxu0
    %v94 = vadd.f32 0.0, %v93
    %95 = vdwg.mxu0
    %vm96 = vcmask 64512
    %v97 = vsel %vm96, %v91, -inf
    %98 = vmax.xlane.f32.xlu0 %v97
    %v99 = vpop.xlane.xlu0 %98
    %v100 = vsel %vm96, %v94, -inf
    %101 = vmax.xlane.f32.xlu0 %v100
    %v102 = vpop.xlane.xlu0 %101
    %v103 = vsub.f32 %v91, %v99
    %v104 = vsub.f32 %v94, %v102
    %v105 = vmul.f32 %v103, 1.442695
    %v106 = vpow.pop %v105
    %v107 = vmul.f32 %v104, 1.442695
    %v108 = vpow.pop %v107
    %v109 = vsel %vm96, %v106, 0.0
    %110 = vadd.xlane.f32.xlu0 %v109
    %v111 = vpop.xlane.xlu0 %110
    %v112 = vsel %vm96, %v108, 0.0
    %113 = vadd.xlane.f32.xlu0 %v112
    %v114 = vpop.xlane.xlu0 %113
    %v115 = vlog2.pop %v111
    %v116 = vmul.f32 %v115, 0.6931472
    %v117 = vlog2.pop %v114
    %v118 = vmul.f32 %v117, 0.6931472
    %v119 = vadd.f32 %v116, %v99
    %v120 = vadd.f32 %v118, %v102
    %v121 = vlaneseq
    %v122 = vshrl.u32 %v121, 7
    %v123 = vlaneseq
    %v124 = vand.u32 %v123, 127
    %vm125 = vcmp.eq.s32.totalorder %v122, %v124
    %v126 = vsel %vm125, 1, 0
    %v127 = vcvt.s32.f32 %v126
    %v128 = vmul.f32 %v91, %v127
    %v129 = vmul.f32 %v94, %v127
    %v130 = vsel %vm96, %v128, 0.0
    %131 = vadd.xlane.f32.xlu0 %v130
    %v132 = vpop.xlane.xlu0 %131
    %v133 = vsel %vm96, %v129, 0.0
    %134 = vadd.xlane.f32.xlu0 %v133
    %v135 = vpop.xlane.xlu0 %134
    %v136 = vsub.f32 %v119, %v132
    %v137 = vsub.f32 %v120, %v135
    %vm138 = vcmp.ge.f32.partialorder %v91, %v99
    %vm139 = vcmp.ge.f32.partialorder %v94, %v102
    %v140 = vsel %vm138, %v124, 8
    %v141 = vsel %vm139, %v124, 8
    %v142 = vsel %vm96, %v140, 2147483647
    %v143 = vand.u32 %v142, 65535
    %v144 = vshra.s32 %v142, 16
    %v145 = vcvt.s32.f32 %v143
    %v146 = vcvt.s32.f32 %v144
    %147 = vmin.xlane.f32.xlu0 %v146
    %v148 = vpop.xlane.xlu0 %147
    %vm149 = vcmp.eq.f32.partialorder %v146, %v148
    %v150 = vsel %vm149, %v145, inf
    %151 = vmin.xlane.f32.xlu0 %v150
    %v152 = vpop.xlane.xlu0 %151
    %v153 = vcvt.f32.s32 %v152
    %v154 = vcvt.f32.s32 %v148
    %v155 = vshll.u32 %v154, 16
    %v156 = vadd.s32 %v155, %v153
    %v157 = vsel %vm96, %v141, 2147483647
    %v158 = vand.u32 %v157, 65535
    %v159 = vshra.s32 %v157, 16
    %v160 = vcvt.s32.f32 %v158
    %v161 = vcvt.s32.f32 %v159
    %162 = vmin.xlane.f32.xlu0 %v161
    %v163 = vpop.xlane.xlu0 %162
    %vm164 = vcmp.eq.f32.partialorder %v161, %v163
    %v165 = vsel %vm164, %v160, inf
    %166 = vmin.xlane.f32.xlu0 %v165
    %v167 = vpop.xlane.xlu0 %166
    %v168 = vcvt.f32.s32 %v167
    %v169 = vcvt.f32.s32 %v163
    %v170 = vshll.u32 %v169, 16
    %v171 = vadd.s32 %v170, %v168
    %v172 = vlaneseq
    %v173 = vshrl.u32 %v172, 7
    %175 = vset.pattern.permute.xlu0 %v173
    %176 = vperm.xlu0 %175, %v124
    %v177 = vpop.permute.xlu0 %176
    %vm178 = vcmp.eq.s32.totalorder %v156, %v177
    %vm179 = vcmp.eq.s32.totalorder %v171, %v177
    %v180 = vsel %vm178, 1, 0
    %v181 = vsel %vm179, 1, 0
    %v182 = vcvt.s32.f32 %v180
    %v183 = vcvt.s32.f32 %v181
    %vm184 = vcmp.gt.f32.partialorder %v71, 0.0
    %vm185 = vcmp.gt.f32.partialorder %v72, 0.0
    %v186 = vsel %vm184, 1, 0
    %v187 = vsel %vm185, 1, 0
    %v188 = vcvt.s32.f32 %v186
    %v189 = vcvt.s32.f32 %v187
    %192 = vst [vmem:[#allocation1] ss:$9 sm:$0xff] %v188
    %s193 = scalar_lea.vmem [#allocation1], 1
    %194 = vst [vmem:[%s193] ss:$9 sm:$0xff] %v189
    %v195 = vld [vmem:[#allocation1] sm:$0xff]
    %vm197 = vcmask 58368
    %v198 = vsel %vm197, %v195, 0.0
    %199 = vadd.xlane.f32.xlu0 %v198
    %v200 = vpop.xlane.xlu0 %199
    %v201 = vperm.slane %v188, 0
    %v202 = vperm.slane %v189, 0
    %v203 = vlaneseq
    %v204 = vshrl.u32 %v203, 7
    %206 = vset.pattern.permute.xlu0 %v204
    %207 = vperm.xlu0 %206, %v201
    %v208 = vpop.permute.xlu0 %207
    %v209 = vlaneseq
    %v210 = vshrl.u32 %v209, 7
    %212 = vset.pattern.permute.xlu0 %v210
    %213 = vperm.xlu0 %212, %v202
    %v214 = vpop.permute.xlu0 %213
    %v217 = vmul.f32 %v136, %v208
    %v218 = vmul.f32 %v137, %v214
    %221 = vset.pattern.permute.xlu0 0
    %222 = vperm.xlu0 %221, %v217
    %v223 = vpop.permute.xlu0 %222
    %224 = vset.pattern.permute.xlu0 0
    %225 = vperm.xlu0 %224, %v218
    %v226 = vpop.permute.xlu0 %225
    %v227 = vperm.slane %v223, %v124
    %v228 = vperm.slane %v226, %v124
    %vm229 = vcmask 1041409
    %v230 = vsel %vm229, %v228, %v227
    %v232 = vsel %vm197, %v230, 0.0
    %233 = vadd.xlane.f32.xlu0 %v232
    %v234 = vpop.xlane.xlu0 %233
    %v235 = vmax.f32 %v200, 1.0
    %v236 = vrcp.pop %v235
    %v237 = vmul.f32 %v235, %v236
    %v238 = vsub.f32 1.0, %v237
    %v239 = vmul.f32 %v236, %v238
    %v240 = vadd.f32 %v236, %v239
    %vm241 = vweird.f32 %v235
    %vm242 = vweird.f32 %v236
    %vm243 = vmor %vm241, %vm242
    %v244 = vsel %vm243, %v236, %v240
    %v245 = vand.u32 2147483647, %v235
    %vm246 = vcmp.eq.f32.partialorder %v245, 8.507059e+37
    %v247 = vand.u32 %v235, 2147483648
    %v248 = vor.u32 1.1754944e-38, %v247
    %v249 = vsel %vm246, %v248, %v244
    %v250 = vmul.f32 %v234, %v249
    %v251 = vld [vmem:[#allocation2] sm:$0x1]
    %vm252 = vcmask 1041408
    %v253 = vsel %vm252, %v250, 0.0
    %v254 = vrot.slane %v253, 4
    %v255 = vadd.f32 %v253, %v254
    %v256 = vrot.slane %v255, 2
    %v257 = vadd.f32 %v255, %v256
    %v258 = vrot.slane %v257, 1
    %v259 = vadd.f32 %v257, %v258
    %v260 = vadd.f32 %v251, %v259
    %vm261 = vcmask 0
    %262 = vst.msk [vmem:[#allocation2] sm:$0x1] %vm261, %v260
    %v263 = vld [vmem:[#allocation3] sm:$0x1]
    %v264 = vmul.f32 %v182, %v208
    %v265 = vmul.f32 %v183, %v214
    %268 = vset.pattern.permute.xlu0 0
    %269 = vperm.xlu0 %268, %v264
    %v270 = vpop.permute.xlu0 %269
    %271 = vset.pattern.permute.xlu0 0
    %272 = vperm.xlu0 %271, %v265
    %v273 = vpop.permute.xlu0 %272
    %v274 = vperm.slane %v270, %v124
    %v275 = vperm.slane %v273, %v124
    %v276 = vsel %vm229, %v275, %v274
    %v278 = vsel %vm197, %v276, 0.0
    %279 = vadd.xlane.f32.xlu0 %v278
    %v280 = vpop.xlane.xlu0 %279
    %v281 = vsel %vm252, %v280, 0.0
    %v282 = vrot.slane %v281, 4
    %v283 = vadd.f32 %v281, %v282
    %v284 = vrot.slane %v283, 2
    %v285 = vadd.f32 %v283, %v284
    %v286 = vrot.slane %v285, 1
    %v287 = vadd.f32 %v285, %v286
    %v288 = vadd.f32 %v263, %v287
    %289 = vst.msk [vmem:[#allocation3] sm:$0x1] %vm261, %v288
    %v290 = vld [vmem:[#allocation4] sm:$0x1]
    %v291 = vsel %vm252, %v200, 0.0
    %v292 = vrot.slane %v291, 4
    %v293 = vadd.f32 %v291, %v292
    %v294 = vrot.slane %v293, 2
    %v295 = vadd.f32 %v293, %v294
    %v296 = vrot.slane %v295, 1
    %v297 = vadd.f32 %v295, %v296
    %v298 = vadd.f32 %v290, %v297
    %299 = vst.msk [vmem:[#allocation4] sm:$0x1] %vm261, %v298
    // Predicated region
    $region30: #{tpu_custom_call.1} parent=1 // pred_check
      %p300 = pneg %p60
    $region31: #{tpu_custom_call.1} parent=1 // pred_check_branch
      %302 = sbr.rel (%p300) target = $region33
    $region32: #{tpu_custom_call.1} parent=1 // pred_region
      %v303 = vld [vmem:[#allocation2] sm:$0x1]
      %v304 = vmul.f32 %v303, 0.5
      %305 = vst.msk [vmem:[#allocation11] sm:$0x1] %vm261, %v304
      %v306 = vld [vmem:[#allocation3] sm:$0x1]
      %v307 = vld [vmem:[#allocation4] sm:$0x1]
      %v308 = vrcp.pop %v307
      %v309 = vmul.f32 %v307, %v308
      %v310 = vsub.f32 1.0, %v309
      %v311 = vmul.f32 %v308, %v310
      %v312 = vadd.f32 %v308, %v311
      %vm313 = vweird.f32 %v307
      %vm314 = vweird.f32 %v308
      %vm315 = vmor %vm313, %vm314
      %v316 = vsel %vm315, %v308, %v312
      %v317 = vand.u32 2147483647, %v307
      %vm318 = vcmp.eq.f32.partialorder %v317, 8.507059e+37
      %v319 = vand.u32 %v307, 2147483648
      %v320 = vor.u32 1.1754944e-38, %v319
      %v321 = vsel %vm318, %v320, %v316
      %v322 = vmul.f32 %v306, %v321
      %v324 = vperm.slane %v322, 0
      %325 = vrot.lane.b32.xlu0 %v324, 1
      %v326 = vpop.permute.xlu0 %325
      %vm328 = vcmask 8200
      %329 = vst.msk [vmem:[#allocation11] sm:$0x1] %vm328, %v326
    $region33: #{tpu_custom_call.1} parent=1 // pred_fallthru
      _
    // Predicated region
    $region34: #{tpu_custom_call.1} parent=1 // pred_check
      _
    $region35: #{tpu_custom_call.1} parent=1 // pred_check_branch
      %331 = sbr.rel (0) target = $region37
    $region36: #{tpu_custom_call.1} parent=1 // pred_region
      %333 = vsyncadd [#allocation7], 0
      %s335 = sshll.u32 [#allocation11], 4
      %s336 = int_to_ptr.vmem [resolvable:$true] %s335
      %s337 = sshll.u32 %s3, 4
      %s338 = int_to_ptr.hbm [resolvable:$true] %s337
      %340 = dma.vmem_to_hbm [thread:$0]  %s336, 16, %s338, [#allocation7]
    $region37: #{tpu_custom_call.1} parent=1 // pred_fallthru
      _
    // Predicated region
    $region38: #{tpu_custom_call.1} parent=1 // pred_check
      _
    $region39: #{tpu_custom_call.1} parent=1 // pred_check_branch
      %342 = sbr.rel (0) target = $region41
    $region40: #{tpu_custom_call.1} parent=1 // pred_region
      %344 = dma.done [#allocation7], 16
    $region41: #{tpu_custom_call.1} parent=1 // pred_fallthru
      _
    %345 = vsyncpa [#allocation6], 1
    %346 = vsyncpa [#allocation9], 1
    %347 = vsyncpa [#allocation7], 1

</llo_original>
